<compile_context>
chip_gen: v5e
topology: v5e:2x2
jax: 0.10.0
libtpu: 0.0.40
codegen_flags: <defaults>
</compile_context>

<pallas_src>
import jax
import jax.numpy as jnp
import numpy as np
from jax.experimental import pallas as pl
from jax.experimental.pallas import tpu as pltpu


_VMEM_LIMIT = 48 * 1024 * 1024   # safe on v7x (64 MiB physical), ample on v5e/v6e


# ----------------------------- Pallas kernels --------------------------------
def depth_mix_kernel(dw_ref, w_stack_ref, o_ref):
    """One-shot depth mix: o = sum_l dw[l] * w_stack[l], cast to bf16.

    dw_ref      : SMEM (L,)         depth weights (scalar prefetch)
    w_stack_ref : VMEM (L, tk, tn)  stacked, pre-transposed weight tiles (f32)
    o_ref       : VMEM (tk, tn)     mixed weight tile (bf16)
    """
    L = w_stack_ref.shape[0]
    acc = dw_ref[0] * w_stack_ref[0]
    for l in range(1, L):
        acc = acc + dw_ref[l] * w_stack_ref[l]
    o_ref[...] = acc.astype(o_ref.dtype)


def matmul_bias_kernel(x_ref, w_ref, b_ref, o_ref, acc_ref):
    """One (tm, tn) output tile, accumulating over the K grid axis.

    x_ref  : VMEM (tm, tk) bf16   input tile
    w_ref  : VMEM (tk, tn) bf16   pre-mixed weight tile
    b_ref  : VMEM (1, tn)  f32    pre-mixed bias row
    o_ref  : VMEM (tm, tn) f32    output tile
    acc_ref: VMEM (tm, tn) f32    accumulator scratch
    """
    k = pl.program_id(2)

    @pl.when(k == 0)
    def _init():
        acc_ref[...] = jnp.zeros_like(acc_ref)

    acc_ref[...] += jnp.dot(x_ref[...], w_ref[...],
                            preferred_element_type=jnp.float32)

    @pl.when(k == pl.num_programs(2) - 1)
    def _finalize():
        o_ref[...] = (acc_ref[...] + b_ref[...]).astype(o_ref.dtype)


# ------------------------------- tiling helpers -------------------------------
def _round_up(x, m):
    return ((x + m - 1) // m) * m


def _pick_tile(dim, pref, align):
    """Tile <= pref (multiple of `align`) minimizing the padded extent."""
    dim_r = _round_up(dim, align)
    if dim_r <= pref:
        return dim_r
    best_t, best_pad = None, None
    t = (pref // align) * align
    while t >= align:
        pad = _round_up(dim, t)
        if best_pad is None or pad < best_pad:
            best_t, best_pad = t, pad
        t -= align
    return best_t


def _premix_weight(depth_w, w_stack_p, tk, tn):
    """Mix the padded (L, Kp, Np) f32 stack into a single bf16 (Kp, Np) weight."""
    L, Kp, Np = w_stack_p.shape
    # One-shot Pallas pass if the (L, tk, tn) block fits comfortably; otherwise
    # fall back to plain XLA (identical result), e.g. for very large L.
    block_bytes = 2 * L * tk * tn * 4 + 2 * tk * tn * 2
    if block_bytes > 32 * 1024 * 1024:
        return jnp.einsum("l,lkn->kn", depth_w, w_stack_p).astype(jnp.bfloat16)
    return pl.pallas_call(
        depth_mix_kernel,
        out_shape=jax.ShapeDtypeStruct((Kp, Np), jnp.bfloat16),
        grid_spec=pltpu.PrefetchScalarGridSpec(
            num_scalar_prefetch=1,                      # depth weights -> SMEM
            grid=(Kp // tk, Np // tn),
            in_specs=[pl.BlockSpec((L, tk, tn), lambda i, j, dw: (0, i, j))],
            out_specs=pl.BlockSpec((tk, tn), lambda i, j, dw: (i, j)),
        ),
        compiler_params=pltpu.CompilerParams(
            dimension_semantics=("parallel", "parallel"),
            vmem_limit_bytes=_VMEM_LIMIT,
        ),
    )(depth_w, w_stack_p)


# --------------------------------- wrapper ------------------------------------
def translinear_forward(x, w_stack_t, b_stack, depth_w, depth_b,
                        tm=None, tn=None, tk=None):
    """x: (..., in_features); w_stack_t: (L, in_features, out_features);
    b_stack: (L, out_features); depth_w/depth_b: (L,). Returns (..., out) f32."""
    *lead, K = x.shape
    L, K_w, N = w_stack_t.shape
    assert K == K_w, "in_features mismatch between input and weight stack"

    x2d = x.reshape(-1, K).astype(jnp.bfloat16)       # bf16 stream into the MXU
    M = x2d.shape[0]

    # ---- adaptive tile selection ----
    if tm is None:
        tm = _round_up(max(M, 8), 16) if M <= 512 else _pick_tile(M, 512, 256)
    else:
        tm = _round_up(min(tm, _round_up(M, 16)), 16)
    if tn is None:
        n_r = _round_up(N, 128)
        tn = n_r if n_r <= 1024 else _pick_tile(N, 512, 256)
    else:
        tn = _round_up(min(tn, _round_up(N, 128)), 128)
    if tk is None:
        tk = _pick_tile(K, 1024, 128)
    else:
        tk = _round_up(min(tk, _round_up(K, 128)), 128)

    Mp, Kp, Np = _round_up(M, tm), _round_up(K, tk), _round_up(N, tn)

    # Zero padding: extra K contributes 0 to the dot; extra M/N is sliced off.
    x_p = jnp.pad(x2d, ((0, Mp - M), (0, Kp - K)))
    w_p = jnp.pad(w_stack_t.astype(jnp.float32),
                  ((0, 0), (0, Kp - K), (0, Np - N)))
    b_p = jnp.pad(b_stack.astype(jnp.float32), ((0, 0), (0, Np - N)))

    depth_w = depth_w.astype(jnp.float32)
    depth_b = depth_b.astype(jnp.float32)

    # Pre-mix weight (one-shot Pallas pass) and bias (tiny) OUTSIDE the hot grid.
    w_mixed = _premix_weight(depth_w, w_p, tk, tn)                 # (Kp, Np) bf16
    b_mixed = jnp.einsum("l,ln->n", depth_b, b_p)[None, :]         # (1, Np)  f32

    grid = (Mp // tm, Np // tn, Kp // tk)

    cost = pl.CostEstimate(
        flops=2 * Mp * Np * Kp,
        transcendentals=0,
        bytes_accessed=(2 * Mp * Kp * grid[1]        # x re-streamed per N tile
                        + 2 * Kp * Np * grid[0]      # bf16 weight per M tile
                        + 4 * Mp * Np + 4 * Np),
    )

    out = pl.pallas_call(
        matmul_bias_kernel,
        out_shape=jax.ShapeDtypeStruct((Mp, Np), jnp.float32),
        grid_spec=pltpu.PrefetchScalarGridSpec(
            num_scalar_prefetch=0,
            grid=grid,
            in_specs=[
                pl.BlockSpec((tm, tk), lambda i, j, k: (i, k)),    # x   (bf16)
                pl.BlockSpec((tk, tn), lambda i, j, k: (k, j)),    # w   (bf16)
                pl.BlockSpec((1, tn), lambda i, j, k: (0, j)),     # bias (f32)
            ],
            out_specs=pl.BlockSpec((tm, tn), lambda i, j, k: (i, j)),
            scratch_shapes=[pltpu.VMEM((tm, tn), jnp.float32)],
        ),
        compiler_params=pltpu.CompilerParams(
            dimension_semantics=("parallel", "parallel", "arbitrary"),
            vmem_limit_bytes=_VMEM_LIMIT,
        ),
        cost_estimate=cost,
    )(x_p, w_mixed, b_mixed)

    return out[:M, :N].reshape(*lead, N)


# ------------------------- parameter construction (glue) ----------------------
def normalized_uniform_init(key, shape):
    """'rand' init scheme: uniform, normalized along the last axis."""
    w = jax.random.uniform(key, shape, dtype=jnp.float32)
    return w / jnp.sum(w, axis=-1, keepdims=True)


def build_weight_stacks(small_ws, small_bs, width_ins, width_outs):
    """Replicates TransLinear.get_params() width expansion + stacking.

    Returns the weight stack pre-transposed to (L, in_features, out_features)
    so the kernel contracts x(tm,tk) @ w(tk,tn) with out_features on the lane
    axis (lane-dense output stores)."""
    ws, bs = [], []
    for w, b, wi, wo in zip(small_ws, small_bs, width_ins, width_outs):
        w_t = jnp.concatenate([w, w @ wi.T], axis=1)      # (out_small, in_features)
        w_t = jnp.concatenate([w_t, wo @ w_t], axis=0)    # (out_features, in_features)
        b_t = jnp.concatenate([b, wo @ b], axis=0)        # (out_features,)
        ws.append(w_t.T)                                  # (in_features, out_features)
        bs.append(b_t)
    return jnp.stack(ws, axis=0), jnp.stack(bs, axis=0)   # (L,in,out), (L,out)


# ------------------------------ pure-JAX reference ----------------------------
def reference_forward(x2d, w_stack_t, b_stack, depth_w, depth_b):
    weight = jnp.sum(w_stack_t * depth_w[:, None, None], axis=0)   # (in, out)
    bias = jnp.sum(b_stack * depth_b[:, None], axis=0)             # (out,)
    return x2d @ weight + bias


# ------------------------------------ main ------------------------------------
def _make_case(key, L, in_small, out_small, in_features, out_features, batch, seq):
    keys = jax.random.split(key, 4 * L + 3)
    small_ws = [jax.random.uniform(keys[i], (out_small, in_small),
                                   minval=-0.25, maxval=0.25, dtype=jnp.float32)
                for i in range(L)]
    small_bs = [jax.random.uniform(keys[L + i], (out_small,),
                                   minval=-0.25, maxval=0.25, dtype=jnp.float32)
                for i in range(L)]
    width_ins = [normalized_uniform_init(keys[2 * L + i],
                                         (in_features - in_small, in_small))
                 for i in range(L)]
    width_outs = [normalized_uniform_init(keys[3 * L + i],
                                          (out_features - out_small, out_small))
                  for i in range(L)]
    depth_w = normalized_uniform_init(keys[4 * L], (L,))
    depth_b = normalized_uniform_init(keys[4 * L + 1], (L,))
    x = jax.random.normal(keys[4 * L + 2], (batch, seq, in_features),
                          dtype=jnp.float32)
    w_stack_t, b_stack = build_weight_stacks(small_ws, small_bs,
                                             width_ins, width_outs)
    return x, w_stack_t, b_stack, depth_w, depth_b


def _run_case(x, w_stack_t, b_stack, depth_w, depth_b, **tiles):
    out = translinear_forward(x, w_stack_t, b_stack, depth_w, depth_b, **tiles)
    out = jax.block_until_ready(out)
    in_features = x.shape[-1]
    out_features = w_stack_t.shape[-1]
    ref = reference_forward(x.reshape(-1, in_features), w_stack_t, b_stack,
                            depth_w, depth_b).reshape(*x.shape[:-1], out_features)
    np.testing.assert_allclose(np.asarray(out), np.asarray(ref),
                               rtol=2e-2, atol=2e-2)


if __name__ == "__main__":
    key = jax.random.PRNGKey(0)
    k1, k2, k3 = jax.random.split(key, 3)

    # Small, module-consistent shapes: 2 tied small modules, 16 -> 32 expansion.
    _run_case(*_make_case(k1, L=2, in_small=16, out_small=16,
                          in_features=32, out_features=32, batch=2, seq=8))

    # Non-128-aligned M/K/N: exercises zero-padding on every axis (auto tiles).
    _run_case(*_make_case(k2, L=3, in_small=96, out_small=80,
                          in_features=320, out_features=200, batch=2, seq=56))

    # Multi-tile grid with explicit small tiles: exercises the K-accumulation
    # sweep (k==0 init / k==last epilogue), M padding, and the pipelined grid.
    _run_case(*_make_case(k3, L=2, in_small=256, out_small=192,
                          in_features=512, out_features=384, batch=2, seq=200),
              tm=128, tn=128, tk=128)

    # TODO(synk): residual=True path (per-module residual_weight/bias added to
    # each expanded weight before the depth mix) is not wired in; the default
    # TransLinear config uses residual=False.
    print("KERNEL_OK")
</pallas_src>

<mosaic_0001>
module attributes {stable_mosaic.version = 11 : i64} {
  func.func @depth_mix_kernel(%arg0: i32, %arg1: i32, %arg2: memref<2xf32, #tpu.memory_space<smem>>, %arg3: memref<2x128x128xf32, #tpu.memory_space<vmem>>, %arg4: memref<128x128xbf16, #tpu.memory_space<vmem>>) attributes {dimension_semantics = [#tpu.dimension_semantics<parallel>, #tpu.dimension_semantics<parallel>], iteration_bounds = array<i64: 1, 1>, scalar_prefetch = 1 : i64, scratch_operands = 0 : i64, tpu.core_type = #tpu.core_type<tc>, window_params = [{transform_indices = @transform_0, window_bounds = array<i64: 2, 128, 128>}, {transform_indices = @transform_1, window_bounds = array<i64: 128, 128>}]} {
    %c0 = arith.constant 0 : index
    %0 = memref.load %arg2[%c0] : memref<2xf32, #tpu.memory_space<smem>>
    %c0_0 = arith.constant 0 : index
    %c0_1 = arith.constant 0 : index
    %c0_2 = arith.constant 0 : index
    %1 = vector.load %arg3[%c0_0, %c0_1, %c0_2] : memref<2x128x128xf32, #tpu.memory_space<vmem>>, vector<1x128x128xf32>
    %2 = vector.shape_cast %1 : vector<1x128x128xf32> to vector<128x128xf32>
    %3 = vector.broadcast %0 : f32 to vector<128x128xf32>
    %4 = arith.mulf %3, %2 : vector<128x128xf32>
    %c1 = arith.constant 1 : index
    %5 = memref.load %arg2[%c1] : memref<2xf32, #tpu.memory_space<smem>>
    %c1_3 = arith.constant 1 : index
    %c0_4 = arith.constant 0 : index
    %c0_5 = arith.constant 0 : index
    %6 = vector.load %arg3[%c1_3, %c0_4, %c0_5] : memref<2x128x128xf32, #tpu.memory_space<vmem>>, vector<1x128x128xf32>
    %7 = vector.shape_cast %6 : vector<1x128x128xf32> to vector<128x128xf32>
    %8 = vector.broadcast %5 : f32 to vector<128x128xf32>
    %9 = arith.mulf %8, %7 : vector<128x128xf32>
    %10 = arith.addf %4, %9 : vector<128x128xf32>
    %11 = arith.truncf %10 : vector<128x128xf32> to vector<128x128xbf16>
    %c0_6 = arith.constant 0 : index
    %c0_7 = arith.constant 0 : index
    %12 = vector.load %arg4[%c0_6, %c0_7] : memref<128x128xbf16, #tpu.memory_space<vmem>>, vector<128x128xbf16>
    tpu.vector_store %arg4[%c0_6, %c0_7], %11 {strides = array<i32>} : memref<128x128xbf16, #tpu.memory_space<vmem>>, vector<128x128xbf16>,
    return
  }
  func.func @transform_0(%arg0: i32, %arg1: i32, %arg2: memref<2xf32, #tpu.memory_space<smem>>) -> (i32, i32, i32) {
    %c0_i32 = arith.constant 0 : i32
    %c0_i32_0 = arith.constant 0 : i32
    return %c0_i32, %arg0, %arg1 : i32, i32, i32
  }
  func.func @transform_1(%arg0: i32, %arg1: i32, %arg2: memref<2xf32, #tpu.memory_space<smem>>) -> (i32, i32) {
    %c0_i32 = arith.constant 0 : i32
    return %arg0, %arg1 : i32, i32
  }
}

</mosaic_0001>

<llo_original>
// kernel: tpu_custom_call.1
$region0: #{tpu_custom_call.1}
  #allocation0 [shape = 'u32[]', space=smem, size = 0x4, offset = 0x4, fixed_abs, tag = 'smem constant byte address 0x4 - core index']
  #allocation1 [shape = 'u32[72,128]{1,0:T(1,128)}', space=vmem, size = 0x9000, scoped, tag = 'internal scratch']
  #allocation2 [shape = 's32[1]{0}', space=sflag, size = 0x4, scoped, tag = 'scoped memory for tpu_custom_call.1']
  #allocation3 [shape = 'u8[512]{0}', space=smem, size = 0x200, scoped, tag = 'prefetched SMEM operand 0']
  %s0 = inlined_call_operand.hbm [shape: f32[2], index: 0, kind: input, shape index: {}]
  %s1 = inlined_call_operand.hbm [shape: f32[2,128,128], index: 1, kind: input, shape index: {}]
  %s2 = inlined_call_operand.hbm [shape: bf16[128,128], index: 2, kind: output, shape index: {}]
  %s3 = sld [smem:[#allocation0]]
  $region18: #{tpu_custom_call.1} parent=0
    _
  %s5 = ssub.s32 1, %s3
  %s6 = scalar_select 0, %s5, %s3
  %s8 = sshll.u32 %s0, 4
  %s9 = int_to_ptr.hbm [resolvable:$true] %s8
  %11 = dma.hbm_to_smem %s9, 16, [#allocation3], [#allocation2]
  %13 = dma.done [#allocation2], 16
  %14 = sfence
  $region1: #{tpu_custom_call.1} parent=0
    #allocation4 [shape = 'u8[131072]{0}', space=vmem, size = 0x20000, scoped, tag = 'input window, operand 1, single buffered']
    #allocation5 [shape = 's32[1]{0}', space=sflag, size = 0x4, scoped, tag = 'scoped memory for tpu_custom_call.1']
    #allocation6 [shape = 's32[1]{0}', space=sflag, size = 0x4, scoped, tag = 'scoped memory for tpu_custom_call.1']
    #allocation7 [shape = 'u8[32768]{0}', space=vmem, size = 0x8000, scoped, tag = 'output window, operand 0, single buffered']
    %15 = vsyncpa [#allocation5], 0
    %16 = vsyncpa [#allocation6], 0
    // Predicated region
    $region2: #{tpu_custom_call.1} parent=1 // pred_check
      _
    $region3: #{tpu_custom_call.1} parent=1 // pred_check_branch
      %18 = sbr.rel (0) target = $region5
    $region4: #{tpu_custom_call.1} parent=1 // pred_region
      %20 = vsyncadd [#allocation5], 0
      %s21 = sshll.u32 %s1, 4
      %s22 = int_to_ptr.hbm [resolvable:$true] %s21
      %s23 = sshll.u32 [#allocation4], 4
      %s24 = int_to_ptr.vmem [resolvable:$true] %s23
      %29 = dma.hbm_to_vmem [thread:$0]  %s22, 4096, %s24, [#allocation5], 128, 128, 8
    $region5: #{tpu_custom_call.1} parent=1 // pred_fallthru
      _
    // Predicated region
    $region6: #{tpu_custom_call.1} parent=1 // pred_check
      _
    $region7: #{tpu_custom_call.1} parent=1 // pred_check_branch
      %31 = sbr.rel (0) target = $region9
    $region8: #{tpu_custom_call.1} parent=1 // pred_region
      %33 = dma.done [#allocation5], 4096
    $region9: #{tpu_custom_call.1} parent=1 // pred_fallthru
      _
    %s34 = sld [smem:[#allocation3]]
    %v35 = vld [vmem:[#allocation4] sm:$0xff]
    %v36 = vld [vmem:[#allocation4 + $0x8] sm:$0xff]
    %v37 = vld [vmem:[#allocation4 + $0x10] sm:$0xff]
    %v38 = vld [vmem:[#allocation4 + $0x18] sm:$0xff]
    %v39 = vld [vmem:[#allocation4 + $0x20] sm:$0xff]
    %v40 = vld [vmem:[#allocation4 + $0x28] sm:$0xff]
    %v41 = vld [vmem:[#allocation4 + $0x30] sm:$0xff]
    %v42 = vld [vmem:[#allocation4 + $0x38] sm:$0xff]
    %v43 = vld [vmem:[#allocation4 + $0x40] sm:$0xff]
    %v44 = vld [vmem:[#allocation4 + $0x48] sm:$0xff]
    %v45 = vld [vmem:[#allocation4 + $0x50] sm:$0xff]
    %v46 = vld [vmem:[#allocation4 + $0x58] sm:$0xff]
    %v47 = vld [vmem:[#allocation4 + $0x60] sm:$0xff]
    %v48 = vld [vmem:[#allocation4 + $0x68] sm:$0xff]
    %v49 = vld [vmem:[#allocation4 + $0x70] sm:$0xff]
    %v50 = vld [vmem:[#allocation4 + $0x78] sm:$0xff]
    %v51 = vstv %s34
    %v52 = vmul.f32 %v51, %v35
    %v53 = vmul.f32 %v51, %v36
    %v54 = vmul.f32 %v51, %v37
    %v55 = vmul.f32 %v51, %v38
    %v56 = vmul.f32 %v51, %v39
    %v57 = vmul.f32 %v51, %v40
    %v58 = vmul.f32 %v51, %v41
    %v59 = vmul.f32 %v51, %v42
    %v60 = vmul.f32 %v51, %v43
    %v61 = vmul.f32 %v51, %v44
    %v62 = vmul.f32 %v51, %v45
    %v63 = vmul.f32 %v51, %v46
    %v64 = vmul.f32 %v51, %v47
    %v65 = vmul.f32 %v51, %v48
    %v66 = vmul.f32 %v51, %v49
    %v67 = vmul.f32 %v51, %v50
    %s68 = sld [smem:[#allocation3 + $0x1]]
    %s69 = scalar_lea.vmem [#allocation4], 128
    %v70 = vld [vmem:[%s69] sm:$0xff]
    %v71 = vld [vmem:[%s69 + $0x8] sm:$0xff]
    %v72 = vld [vmem:[%s69 + $0x10] sm:$0xff]
    %v73 = vld [vmem:[%s69 + $0x18] sm:$0xff]
    %v74 = vld [vmem:[%s69 + $0x20] sm:$0xff]
    %v75 = vld [vmem:[%s69 + $0x28] sm:$0xff]
    %v76 = vld [vmem:[%s69 + $0x30] sm:$0xff]
    %v77 = vld [vmem:[%s69 + $0x38] sm:$0xff]
    %v78 = vld [vmem:[%s69 + $0x40] sm:$0xff]
    %v79 = vld [vmem:[%s69 + $0x48] sm:$0xff]
    %v80 = vld [vmem:[%s69 + $0x50] sm:$0xff]
    %v81 = vld [vmem:[%s69 + $0x58] sm:$0xff]
    %v82 = vld [vmem:[%s69 + $0x60] sm:$0xff]
    %v83 = vld [vmem:[%s69 + $0x68] sm:$0xff]
    %v84 = vld [vmem:[%s69 + $0x70] sm:$0xff]
    %v85 = vld [vmem:[%s69 + $0x78] sm:$0xff]
    %v86 = vstv %s68
    %v87 = vmul.f32 %v86, %v70
    %v88 = vmul.f32 %v86, %v71
    %v89 = vmul.f32 %v86, %v72
    %v90 = vmul.f32 %v86, %v73
    %v91 = vmul.f32 %v86, %v74
    %v92 = vmul.f32 %v86, %v75
    %v93 = vmul.f32 %v86, %v76
    %v94 = vmul.f32 %v86, %v77
    %v95 = vmul.f32 %v86, %v78
    %v96 = vmul.f32 %v86, %v79
    %v97 = vmul.f32 %v86, %v80
    %v98 = vmul.f32 %v86, %v81
    %v99 = vmul.f32 %v86, %v82
    %v100 = vmul.f32 %v86, %v83
    %v101 = vmul.f32 %v86, %v84
    %v102 = vmul.f32 %v86, %v85
    %v103 = vadd.f32 %v52, %v87
    %v104 = vadd.f32 %v53, %v88
    %v105 = vadd.f32 %v54, %v89
    %v106 = vadd.f32 %v55, %v90
    %v107 = vadd.f32 %v56, %v91
    %v108 = vadd.f32 %v57, %v92
    %v109 = vadd.f32 %v58, %v93
    %v110 = vadd.f32 %v59, %v94
    %v111 = vadd.f32 %v60, %v95
    %v112 = vadd.f32 %v61, %v96
    %v113 = vadd.f32 %v62, %v97
    %v114 = vadd.f32 %v63, %v98
    %v115 = vadd.f32 %v64, %v99
    %v116 = vadd.f32 %v65, %v100
    %v117 = vadd.f32 %v66, %v101
    %v118 = vadd.f32 %v67, %v102
    %v119 = vpack.c.bf16 %v103, %v103
    %v120 = vpack.c.bf16 %v104, %v104
    %v121 = vpack.c.bf16 %v105, %v105
    %v122 = vpack.c.bf16 %v106, %v106
    %v123 = vpack.c.bf16 %v107, %v107
    %v124 = vpack.c.bf16 %v108, %v108
    %v125 = vpack.c.bf16 %v109, %v109
    %v126 = vpack.c.bf16 %v110, %v110
    %v127 = vpack.c.bf16 %v111, %v111
    %v128 = vpack.c.bf16 %v112, %v112
    %v129 = vpack.c.bf16 %v113, %v113
    %v130 = vpack.c.bf16 %v114, %v114
    %v131 = vpack.c.bf16 %v115, %v115
    %v132 = vpack.c.bf16 %v116, %v116
    %v133 = vpack.c.bf16 %v117, %v117
    %v134 = vpack.c.bf16 %v118, %v118
    %135 = vst [vmem:[#allocation7] sm:$0xf] %v119
    %136 = vst [vmem:[#allocation7 + $0x4] sm:$0xf] %v120
    %137 = vst [vmem:[#allocation7 + $0x8] sm:$0xf] %v121
    %138 = vst [vmem:[#allocation7 + $0xc] sm:$0xf] %v122
    %139 = vst [vmem:[#allocation7 + $0x10] sm:$0xf] %v123
    %140 = vst [vmem:[#allocation7 + $0x14] sm:$0xf] %v124
    %141 = vst [vmem:[#allocation7 + $0x18] sm:$0xf] %v125
    %142 = vst [vmem:[#allocation7 + $0x1c] sm:$0xf] %v126
    %143 = vst [vmem:[#allocation7 + $0x20] sm:$0xf] %v127
    %144 = vst [vmem:[#allocation7 + $0x24] sm:$0xf] %v128
    %145 = vst [vmem:[#allocation7 + $0x28] sm:$0xf] %v129
    %146 = vst [vmem:[#allocation7 + $0x2c] sm:$0xf] %v130
    %147 = vst [vmem:[#allocation7 + $0x30] sm:$0xf] %v131
    %148 = vst [vmem:[#allocation7 + $0x34] sm:$0xf] %v132
    %149 = vst [vmem:[#allocation7 + $0x38] sm:$0xf] %v133
    %150 = vst [vmem:[#allocation7 + $0x3c] sm:$0xf] %v134
    // Predicated region
    $region10: #{tpu_custom_call.1} parent=1 // pred_check
      _
    $region11: #{tpu_custom_call.1} parent=1 // pred_check_branch
      %152 = sbr.rel (0) target = $region13
    $region12: #{tpu_custom_call.1} parent=1 // pred_region
      %154 = vsyncadd [#allocation6], 0
      %s155 = sshll.u32 [#allocation7], 4
      %s156 = int_to_ptr.vmem [resolvable:$true] %s155
      %s157 = sshll.u32 %s2, 4
      %s158 = int_to_ptr.hbm [resolvable:$true] %s157
      %163 = dma.vmem_to_hbm [thread:$0]  %s156, 1024, %s158, [#allocation6], 64, 64, 4
    $region13: #{tpu_custom_call.1} parent=1 // pred_fallthru
      _
    // Predicated region
    $region14: #{tpu_custom_call.1} parent=1 // pred_check
      _
    $region15: #{tpu_custom_call.1} parent=1 // pred_check_branch
      %165 = sbr.rel (0) target = $region17
    $region16: #{tpu_custom_call.1} parent=1 // pred_region
      %167 = dma.done [#allocation6], 1024
    $region17: #{tpu_custom_call.1} parent=1 // pred_fallthru
      _
    %168 = vsyncpa [#allocation5], 1
    %169 = vsyncpa [#allocation6], 1

</llo_original>
